<compile_context>
chip_gen: v5e
topology: v5e:2x2
jax: 0.10.0
libtpu: 0.0.40
codegen_flags: <defaults>
</compile_context>

<pallas_src>
import functools

import jax
import jax.numpy as jnp
from jax.experimental import pallas as pl
from jax.experimental.pallas import tpu as pltpu


_ACT2FN = {
    "tanh": jnp.tanh,
    "relu": jax.nn.relu,
    # PyTorch nn.GELU defaults to the exact erf form.
    "gelu": functools.partial(jax.nn.gelu, approximate=False),
    "gelu_new": functools.partial(jax.nn.gelu, approximate=True),
    "sigmoid": jax.nn.sigmoid,
}


# ---------------------------------------------------------------------------
# Generation-aware VMEM budgeting
# ---------------------------------------------------------------------------
def _vmem_capacity_bytes():
    try:
        info = pltpu.get_tpu_info()
        cap = getattr(info, "vmem_capacity_bytes", None)
        if cap:
            return int(cap)
    except Exception:
        pass
    return 64 << 20  # conservative fallback = v7x per-TC VMEM


def _divisor_tiles(dim, align, cap):
    """Divisors of `dim` that are multiples of `align` and <= cap.
    Falls back to the full dim (always a legal block dim)."""
    cands = [t for t in range(align, min(cap, dim) + 1, align) if dim % t == 0]
    return cands if cands else [dim]


# ---------------------------------------------------------------------------
# Kernel 1: per-(batch, L-tile) linear projection, dual output (f32 + bf16)
#   y = bf16(x) @ bf16(W) + b   (f32 accumulation)
# ---------------------------------------------------------------------------
def _proj_kernel(x_ref, w_ref, b_ref, o32_ref, o16_ref):
    # x_ref: (1, tL, H)   w_ref: (H, I) bf16   b_ref: (1, I) f32
    y = (
        jnp.dot(x_ref[0].astype(jnp.bfloat16), w_ref[...],
                preferred_element_type=jnp.float32)
        + b_ref[...]
    )
    o32_ref[0] = y
    o16_ref[0] = y.astype(jnp.bfloat16)


def linear_proj(x, w, b, *, max_tile_l=256):
    """Returns (proj_f32, proj_bf16), both (B, L, I). No padding, no post-slice."""
    B, L, H = x.shape
    I = w.shape[1]
    tL = max(_divisor_tiles(L, 8, max_tile_l))
    out32, out16 = pl.pallas_call(
        _proj_kernel,
        out_shape=(jax.ShapeDtypeStruct((B, L, I), jnp.float32),
                   jax.ShapeDtypeStruct((B, L, I), jnp.bfloat16)),
        grid_spec=pltpu.PrefetchScalarGridSpec(
            num_scalar_prefetch=0,
            grid=(B, L // tL),
            in_specs=[
                pl.BlockSpec((1, tL, H), lambda bi, li: (bi, li, 0)),
                pl.BlockSpec((H, I), lambda bi, li: (0, 0)),
                pl.BlockSpec((1, I), lambda bi, li: (0, 0)),
            ],
            out_specs=[
                pl.BlockSpec((1, tL, I), lambda bi, li: (bi, li, 0)),
                pl.BlockSpec((1, tL, I), lambda bi, li: (bi, li, 0)),
            ],
        ),
        compiler_params=pltpu.CompilerParams(
            dimension_semantics=("parallel", "parallel")),
    )(x, w.astype(jnp.bfloat16), b.reshape(1, I).astype(jnp.float32))
    return out32, out16


# ---------------------------------------------------------------------------
# Kernel 2: joiner hot path, grid = (B, T-tiles, V-tiles), V innermost.
#   cache  = bf16(act(enc[ti] + dec))          computed once per T tile (vj==0)
#   logits = cache @ W_dense[:, vj-tile] + b   per V tile (MXU, f32 acc)
# ---------------------------------------------------------------------------
def _joiner_kernel(enc_ref, dec_ref, w_ref, b_ref, o_ref, cache_ref, *,
                   act_fn, t_v, w_resident):
    # enc_ref: (1, tT, I) bf16   dec_ref: (1, U, I) bf16
    # w_ref:   (I, V) bf16 (resident) or (I, tV) bf16 (streamed)
    # b_ref:   (1, V) f32 (resident)
    # o_ref:   (1, tT, U, tV)    cache_ref: (tT*U, I) bf16 scratch
    vj = pl.program_id(2)
    tT = o_ref.shape[1]
    U = o_ref.shape[2]

    @pl.when(vj == 0)
    def _():
        # broadcast-add + activation in f32 (safe on v5e; negligible vs MXU)
        e = enc_ref[0].astype(jnp.float32)                  # (tT, I)
        d = dec_ref[0].astype(jnp.float32)                  # (U, I)
        joined = act_fn(e[:, None, :] + d[None, :, :])      # (tT, U, I) f32
        cache_ref[...] = joined.reshape(tT * U, joined.shape[-1]).astype(
            jnp.bfloat16)

    off = pl.multiple_of(vj * t_v, 128)
    if w_resident:
        w_tile = w_ref[:, pl.ds(off, t_v)]                  # (I, tV)
    else:
        w_tile = w_ref[...]
    b_tile = b_ref[:, pl.ds(off, t_v)]                      # (1, tV)

    logits = (
        jnp.dot(cache_ref[...], w_tile, preferred_element_type=jnp.float32)
        + b_tile
    )                                                        # (tT*U, tV) f32
    o_ref[0] = logits.reshape(tT, U, t_v).astype(o_ref.dtype)


def _joiner_vmem_bytes(tT, U, I, V, tV, out_bytes, w_resident):
    enc = 2 * tT * I * 2                     # bf16, double-buffered
    dec = 2 * U * I * 2
    w = 2 * I * (V if w_resident else tV) * 2
    bias = 2 * V * 4
    out = 2 * tT * U * tV * out_bytes
    cache = tT * U * I * 2
    interm = tT * U * I * 4 + tT * U * tV * 4   # f32 joined + f32 logits
    return enc + dec + w + bias + out + cache + interm


def _choose_joiner_tiles(T, U, I, V, budget, out_bytes, w_resident):
    best = None
    for tV in _divisor_tiles(V, 128, 1024):
        for tT in _divisor_tiles(T, 8, 256):
            if _joiner_vmem_bytes(tT, U, I, V, tV, out_bytes, w_resident) <= budget:
                score = (tT * U) * tV        # prefer big MXU M rows & lane-dense stores
                if best is None or score > best[0]:
                    best = (score, tT, tV)
    if best is None:
        return min(_divisor_tiles(T, 8, 8)), min(_divisor_tiles(V, 128, 128))
    return best[1], best[2]


def joiner_forward(encoder_hidden_states, decoder_hidden_states, params,
                   *, joiner_act="tanh", logits_dtype=jnp.bfloat16):
    """Mirror of TransformerTransducerJoiner.forward (return_dict=False tuple)."""
    act_fn = _ACT2FN[joiner_act] if isinstance(joiner_act, str) else joiner_act

    enc32, enc16 = linear_proj(encoder_hidden_states, params["w_enc"], params["b_enc"])
    dec32, dec16 = linear_proj(decoder_hidden_states, params["w_dec"], params["b_dec"])

    B, T, I = enc16.shape
    U = dec16.shape[1]
    V = params["w_out"].shape[1]
    out_bytes = jnp.dtype(logits_dtype).itemsize

    capacity = _vmem_capacity_bytes()
    budget = min(capacity // 4, 32 << 20)
    w_resident = (I * V * 2) <= min(8 << 20, budget // 2)
    tT, tV = _choose_joiner_tiles(T, U, I, V, budget, out_bytes, w_resident)
    footprint = _joiner_vmem_bytes(tT, U, I, V, tV, out_bytes, w_resident)
    vmem_limit = int(min(2 * footprint + (8 << 20), (capacity * 3) // 4))

    w_out16 = params["w_out"].astype(jnp.bfloat16)           # (I, V)
    b_out2d = params["b_out"].reshape(1, V).astype(jnp.float32)

    kernel = functools.partial(_joiner_kernel, act_fn=act_fn, t_v=tV,
                               w_resident=w_resident)

    if w_resident:
        w_spec = pl.BlockSpec((I, V), lambda b, ti, vj: (0, 0))      # resident
    else:
        w_spec = pl.BlockSpec((I, tV), lambda b, ti, vj: (0, vj))    # streamed

    cost = pl.CostEstimate(
        flops=2 * B * T * U * I * V + B * T * U * I,
        transcendentals=B * T * U * I,
        bytes_accessed=(B * T * I * 2 + B * U * I * 2 + I * V * 2 + V * 4
                        + B * T * U * V * out_bytes),
    )

    # TODO(synk): a decode-specialized path could fold (T, U) into one M axis
    # when U == 1 to fill the MXU; U is already un-padded so no bytes are wasted.
    logits = pl.pallas_call(
        kernel,
        out_shape=jax.ShapeDtypeStruct((B, T, U, V), logits_dtype),
        grid_spec=pltpu.PrefetchScalarGridSpec(
            num_scalar_prefetch=0,
            # V innermost ("arbitrary") so the per-T-tile activation cache is
            # populated at vj==0 and reused across the V sweep; B, T parallel.
            grid=(B, T // tT, V // tV),
            in_specs=[
                pl.BlockSpec((1, tT, I), lambda b, ti, vj: (b, ti, 0)),
                pl.BlockSpec((1, U, I), lambda b, ti, vj: (b, 0, 0)),
                w_spec,
                pl.BlockSpec((1, V), lambda b, ti, vj: (0, 0)),       # bias resident
            ],
            out_specs=pl.BlockSpec((1, tT, U, tV),
                                   lambda b, ti, vj: (b, ti, 0, vj)),
            scratch_shapes=[pltpu.VMEM((tT * U, I), jnp.bfloat16)],
        ),
        compiler_params=pltpu.CompilerParams(
            dimension_semantics=("parallel", "parallel", "arbitrary"),
            vmem_limit_bytes=vmem_limit,
        ),
        cost_estimate=cost,
    )(enc16, dec16, w_out16, b_out2d)

    # match PyTorch module output shapes for the projected hidden states (f32)
    return logits, enc32[:, :, None, :], dec32[:, None, :, :]


# ---------------------------------------------------------------------------
# Deterministic parameter init (nn.Linear-style uniform(-1/sqrt(fan_in), ...))
# ---------------------------------------------------------------------------
def init_params(key, hidden_size, intermediate_size, vocab_size):
    ks = jax.random.split(key, 6)

    def u(k, shape, fan_in):
        lim = 1.0 / jnp.sqrt(fan_in)
        return jax.random.uniform(k, shape, jnp.float32, -lim, lim)

    return {
        "w_enc": u(ks[0], (hidden_size, intermediate_size), hidden_size),
        "b_enc": u(ks[1], (intermediate_size,), hidden_size),
        "w_dec": u(ks[2], (hidden_size, intermediate_size), hidden_size),
        "b_dec": u(ks[3], (intermediate_size,), hidden_size),
        "w_out": u(ks[4], (intermediate_size, vocab_size), intermediate_size),
        "b_out": u(ks[5], (vocab_size,), intermediate_size),
    }


def joiner_reference(enc_hs, dec_hs, p, act="tanh"):
    """Pure-JAX f32 reference for correctness check."""
    act_fn = _ACT2FN[act]
    e = enc_hs @ p["w_enc"] + p["b_enc"]          # (B, T, I)
    d = dec_hs @ p["w_dec"] + p["b_dec"]          # (B, U, I)
    j = act_fn(e[:, :, None, :] + d[:, None, :, :])
    logits = j @ p["w_out"] + p["b_out"]
    return logits, e[:, :, None, :], d[:, None, :, :]


if __name__ == "__main__":
    # small but tiling-exercising shapes: T tiled, V a multiple of 128,
    # lane-aligned I; no padding anywhere (T, V tiles are exact divisors).
    B, T, U, H, I, V = 2, 96, 8, 64, 128, 384

    key = jax.random.PRNGKey(0)
    k_enc, k_dec, k_params = jax.random.split(key, 3)

    encoder_hidden_states = jax.random.normal(k_enc, (B, T, H), jnp.float32)
    decoder_hidden_states = jax.random.normal(k_dec, (B, U, H), jnp.float32)
    params = init_params(k_params, H, I, V)

    logits, enc_out, dec_out = joiner_forward(
        encoder_hidden_states, decoder_hidden_states, params, joiner_act="tanh"
    )
    jax.block_until_ready((logits, enc_out, dec_out))

    ref_logits, ref_enc, ref_dec = joiner_reference(
        encoder_hidden_states, decoder_hidden_states, params
    )
    assert logits.shape == (B, T, U, V)
    assert enc_out.shape == (B, T, 1, I)
    assert dec_out.shape == (B, 1, U, I)
    # projections: bf16 MXU inputs, f32 accumulation -> ~1e-2 accuracy
    assert jnp.allclose(enc_out, ref_enc, atol=2e-2, rtol=2e-2)
    assert jnp.allclose(dec_out, ref_dec, atol=2e-2, rtol=2e-2)
    # logits: bf16 matmul inputs + bf16 output dtype -> looser tolerance
    assert jnp.allclose(logits.astype(jnp.float32), ref_logits, atol=5e-2, rtol=5e-2)

    print("KERNEL_OK")
</pallas_src>

<mosaic_0001>
module attributes {stable_mosaic.version = 11 : i64} {
  func.func @_proj_kernel(%arg0: i32, %arg1: i32, %arg2: memref<1x96x64xf32, #tpu.memory_space<vmem>>, %arg3: memref<64x128xbf16, #tpu.memory_space<vmem>>, %arg4: memref<1x128xf32, #tpu.memory_space<vmem>>, %arg5: memref<1x96x128xf32, #tpu.memory_space<vmem>>, %arg6: memref<1x96x128xbf16, #tpu.memory_space<vmem>>) attributes {dimension_semantics = [#tpu.dimension_semantics<parallel>, #tpu.dimension_semantics<parallel>], iteration_bounds = array<i64: 2, 1>, scalar_prefetch = 0 : i64, scratch_operands = 0 : i64, tpu.core_type = #tpu.core_type<tc>, window_params = [{transform_indices = @transform_0, window_bounds = array<i64: 1, 96, 64>}, {pipeline_mode = #tpu.pipeline_mode<synchronous>, transform_indices = @transform_1, window_bounds = array<i64: 64, 128>}, {pipeline_mode = #tpu.pipeline_mode<synchronous>, transform_indices = @transform_2, window_bounds = array<i64: 1, 128>}, {transform_indices = @transform_3, window_bounds = array<i64: 1, 96, 128>}, {transform_indices = @transform_4, window_bounds = array<i64: 1, 96, 128>}]} {
    %c0 = arith.constant 0 : index
    %c0_0 = arith.constant 0 : index
    %c0_1 = arith.constant 0 : index
    %0 = vector.load %arg2[%c0, %c0_0, %c0_1] : memref<1x96x64xf32, #tpu.memory_space<vmem>>, vector<1x96x64xf32>
    %1 = vector.shape_cast %0 : vector<1x96x64xf32> to vector<96x64xf32>
    %2 = arith.truncf %1 : vector<96x64xf32> to vector<96x64xbf16>
    %c0_2 = arith.constant 0 : index
    %c0_3 = arith.constant 0 : index
    %3 = vector.load %arg3[%c0_2, %c0_3] : memref<64x128xbf16, #tpu.memory_space<vmem>>, vector<64x128xbf16>
    %cst = arith.constant dense<0.000000e+00> : vector<96x128xf32>
    %4 = tpu.matmul %2, %3, %cst {dimension_numbers = #tpu.dot_dimension_numbers<[1], [0], [0], [1], [0, 0, 1, 1], [], []>} : vector<96x64xbf16>, vector<64x128xbf16>, vector<96x128xf32> -> vector<96x128xf32>
    %c0_4 = arith.constant 0 : index
    %c0_5 = arith.constant 0 : index
    %5 = vector.load %arg4[%c0_4, %c0_5] : memref<1x128xf32, #tpu.memory_space<vmem>>, vector<1x128xf32>
    %6 = vector.broadcast %5 : vector<1x128xf32> to vector<96x128xf32>
    %7 = arith.addf %4, %6 : vector<96x128xf32>
    %c0_6 = arith.constant 0 : index
    %c0_7 = arith.constant 0 : index
    %c0_8 = arith.constant 0 : index
    %8 = vector.load %arg5[%c0_6, %c0_7, %c0_8] : memref<1x96x128xf32, #tpu.memory_space<vmem>>, vector<1x96x128xf32>
    %9 = vector.shape_cast %8 : vector<1x96x128xf32> to vector<96x128xf32>
    %10 = vector.shape_cast %7 : vector<96x128xf32> to vector<1x96x128xf32>
    tpu.vector_store %arg5[%c0_6, %c0_7, %c0_8], %10 {strides = array<i32>} : memref<1x96x128xf32, #tpu.memory_space<vmem>>, vector<1x96x128xf32>,
    %11 = arith.truncf %7 : vector<96x128xf32> to vector<96x128xbf16>
    %c0_9 = arith.constant 0 : index
    %c0_10 = arith.constant 0 : index
    %c0_11 = arith.constant 0 : index
    %12 = vector.load %arg6[%c0_9, %c0_10, %c0_11] : memref<1x96x128xbf16, #tpu.memory_space<vmem>>, vector<1x96x128xbf16>
    %13 = vector.shape_cast %12 : vector<1x96x128xbf16> to vector<96x128xbf16>
    %14 = vector.shape_cast %11 : vector<96x128xbf16> to vector<1x96x128xbf16>
    tpu.vector_store %arg6[%c0_9, %c0_10, %c0_11], %14 {strides = array<i32>} : memref<1x96x128xbf16, #tpu.memory_space<vmem>>, vector<1x96x128xbf16>,
    return
  }
  func.func @transform_0(%arg0: i32, %arg1: i32) -> (i32, i32, i32) {
    %c0_i32 = arith.constant 0 : i32
    %c0_i32_0 = arith.constant 0 : i32
    return %arg0, %arg1, %c0_i32 : i32, i32, i32
  }
  func.func @transform_1(%arg0: i32, %arg1: i32) -> (i32, i32) {
    %c0_i32 = arith.constant 0 : i32
    %c0_i32_0 = arith.constant 0 : i32
    %c0_i32_1 = arith.constant 0 : i32
    return %c0_i32, %c0_i32_0 : i32, i32
  }
  func.func @transform_2(%arg0: i32, %arg1: i32) -> (i32, i32) {
    %c0_i32 = arith.constant 0 : i32
    %c0_i32_0 = arith.constant 0 : i32
    %c0_i32_1 = arith.constant 0 : i32
    return %c0_i32, %c0_i32_0 : i32, i32
  }
  func.func @transform_3(%arg0: i32, %arg1: i32) -> (i32, i32, i32) {
    %c0_i32 = arith.constant 0 : i32
    %c0_i32_0 = arith.constant 0 : i32
    return %arg0, %arg1, %c0_i32 : i32, i32, i32
  }
  func.func @transform_4(%arg0: i32, %arg1: i32) -> (i32, i32, i32) {
    %c0_i32 = arith.constant 0 : i32
    %c0_i32_0 = arith.constant 0 : i32
    return %arg0, %arg1, %c0_i32 : i32, i32, i32
  }
}

</mosaic_0001>

<llo_original>
// kernel: tpu_custom_call.1
$region0: #{tpu_custom_call.1}
  #allocation0 [shape = 'u32[]', space=smem, size = 0x4, offset = 0x4, fixed_abs, tag = 'smem constant byte address 0x4 - core index']
  #allocation1 [shape = 'u32[72,128]{1,0:T(1,128)}', space=vmem, size = 0x9000, scoped, tag = 'internal scratch']
  %s0 = inlined_call_operand.vmem [shape: f32[2,96,64], index: 0, kind: input, shape index: {}]
  %s1 = inlined_call_operand.vmem [shape: bf16[64,128], index: 1, kind: input, shape index: {}]
  %s2 = inlined_call_operand.vmem [shape: f32[1,128], index: 2, kind: input, shape index: {}]
  %s3 = inlined_call_operand.hbm [shape: f32[2,96,128], index: 3, kind: output, shape index: {0}]
  %s4 = inlined_call_operand.hbm [shape: bf16[2,96,128], index: 4, kind: output, shape index: {1}]
  %5 = xla_tuple %s3, %s4
  %s6 = sld [smem:[#allocation0]]
  $region53: #{tpu_custom_call.1} parent=0
    _
  %s8 = ssub.s32 1, %s6
  %s9 = scalar_select 0, %s8, %s6
  $region1: #{tpu_custom_call.1} parent=0
    #allocation2 [shape = 'u8[98304]{0}', space=vmem, size = 0x18000, scoped, tag = 'output window, operand 0']
    #allocation3 [shape = 's32[2]{0}', space=sflag, size = 0x8, scoped, tag = 'scoped memory for tpu_custom_call.1']
    #allocation4 [shape = 'u8[49152]{0}', space=vmem, size = 0xc000, scoped, tag = 'output window, operand 1']
    #allocation5 [shape = 's32[2]{0}', space=sflag, size = 0x8, scoped, tag = 'scoped memory for tpu_custom_call.1']
    %10 = vsyncpa [#allocation3], 0
    %s11 = scalar_lea.sflag [#allocation3], 1
    %12 = vsyncpa %s11, 0
    %13 = vsyncpa [#allocation5], 0
    %s14 = scalar_lea.sflag [#allocation5], 1
    %15 = vsyncpa %s14, 0
    loop: start=0, step=1, limit=4
    $region2: #{tpu_custom_call.1} parent=1 // loop_pre_header
      _
    $region3: #{tpu_custom_call.1} parent=1 // loop_header
      %s17 = sphi 0, %s21
      %p18 = scmp.ge.s32.totalorder %s17, 4
      %s24 = sphi 0, %s36
      %s25 = sphi 0, %s32
      %s26 = sphi 0, %s24
      %s27 = sphi 0, %s25
      %s28 = sphi 0, %s26
      %s29 = sphi 0, %s27
      %s41 = sphi 0, %s43
      %s44 = sphi 0, %s41
      %s45 = sphi 0, %s44
      %s61 = sphi 0, %s45
      %s65 = sphi 0, %s65
      %s67 = sphi 0, %s65
      %s68 = sphi 0, %s67
      %s82 = sphi 0, %s68
      %s86 = sphi 0, %s86
      %s88 = sphi 0, %s86
      %s89 = sphi 0, %s88
      %s103 = sphi 0, %s89
      %s111 = sphi 0, %s113
      %s114 = sphi 0, %s111
      %s115 = sphi 0, %s114
      %s131 = sphi 0, %s115
      %s139 = sphi 0, %s141
      %s142 = sphi 0, %s139
      %s143 = sphi 0, %s142
      %s159 = sphi 0, %s143
    $region4: #{tpu_custom_call.1} parent=1 // loop_header_branch
      %20 = sbr.rel (%p18) target = $region8
    $region5: #{tpu_custom_call.1} parent=1 // loop_body
      %s22 = ssub.s32 %s17, 1
      %s23 = ssub.s32 %s17, 2
      %s30 = sadd.s32 1, %s25
      %p31 = scmp.ge.s32.totalorder %s30, 1
      %s32 = scalar_select %p31, 0, %s30
      %s33 = sadd.s32 1, %s24
      %s34 = scalar_select %p31, %s33, %s24
      %p35 = scmp.ge.s32.totalorder %s34, 2
      %s36 = scalar_select %p35, 0, %s34
      %s37 = ssub.s32 %s24, %s36
      %s38 = ssub.s32 %s25, %s32
      %s39 = sor.u32 %s37, %s38
      %p40 = scmp.eq.s32.totalorder %s39, 0
      %s42 = sadd.s32 %s41, 1
      %s43 = scalar_select %p40, %s41, %s42
      %p46 = pneg %p40
      %p47 = scmp.eq.s32.totalorder %s17, 1
      %p48 = por %p46, %p47
      %p49 = scmp.ne.s32.totalorder %s41, %s44
      %p50 = scmp.eq.s32.totalorder %s17, 0
      %p51 = por %p49, %p50
      %p52 = scmp.ne.s32.totalorder %s41, %s44
      %p53 = scmp.eq.s32.totalorder %s22, 1
      %p54 = por %p52, %p53
      %p55 = scmp.ne.s32.totalorder %s44, %s45
      %p56 = scmp.eq.s32.totalorder %s22, 0
      %p57 = por %p55, %p56
      %p58 = scmp.ne.s32.totalorder %s44, %s45
      %p59 = scmp.eq.s32.totalorder %s23, 1
      %p60 = por %p58, %p59
      %p62 = scmp.ne.s32.totalorder %s45, %s61
      %p63 = scmp.eq.s32.totalorder %s23, 0
      %p64 = por %p62, %p63
      %s66 = sadd.s32 %s65, 1
      %p69 = scmp.eq.s32.totalorder %s17, 1
      %p70 = scmp.ne.s32.totalorder %s65, %s67
      %p71 = scmp.eq.s32.totalorder %s17, 0
      %p72 = por %p70, %p71
      %p73 = scmp.ne.s32.totalorder %s65, %s67
      %p74 = scmp.eq.s32.totalorder %s22, 1
      %p75 = por %p73, %p74
      %p76 = scmp.ne.s32.totalorder %s67, %s68
      %p77 = scmp.eq.s32.totalorder %s22, 0
      %p78 = por %p76, %p77
      %p79 = scmp.ne.s32.totalorder %s67, %s68
      %p80 = scmp.eq.s32.totalorder %s23, 1
      %p81 = por %p79, %p80
      %p83 = scmp.ne.s32.totalorder %s68, %s82
      %p84 = scmp.eq.s32.totalorder %s23, 0
      %p85 = por %p83, %p84
      %s87 = sadd.s32 %s86, 1
      %p90 = scmp.eq.s32.totalorder %s17, 1
      %p91 = scmp.ne.s32.totalorder %s86, %s88
      %p92 = scmp.eq.s32.totalorder %s17, 0
      %p93 = por %p91, %p92
      %p94 = scmp.ne.s32.totalorder %s86, %s88
      %p95 = scmp.eq.s32.totalorder %s22, 1
      %p96 = por %p94, %p95
      %p97 = scmp.ne.s32.totalorder %s88, %s89
      %p98 = scmp.eq.s32.totalorder %s22, 0
      %p99 = por %p97, %p98
      %p100 = scmp.ne.s32.totalorder %s88, %s89
      %p101 = scmp.eq.s32.totalorder %s23, 1
      %p102 = por %p100, %p101
      %p104 = scmp.ne.s32.totalorder %s89, %s103
      %p105 = scmp.eq.s32.totalorder %s23, 0
      %p106 = por %p104, %p105
      %s107 = ssub.s32 %s24, %s36
      %s108 = ssub.s32 %s25, %s32
      %s109 = sor.u32 %s107, %s108
      %p110 = scmp.eq.s32.totalorder %s109, 0
      %s112 = sadd.s32 %s111, 1
      %s113 = scalar_select %p110, %s111, %s112
      %p116 = pneg %p110
      %p117 = scmp.eq.s32.totalorder %s17, 1
      %p118 = por %p116, %p117
      %p119 = scmp.ne.s32.totalorder %s111, %s114
      %p120 = scmp.eq.s32.totalorder %s17, 0
      %p121 = por %p119, %p120
      %p122 = scmp.ne.s32.totalorder %s111, %s114
      %p123 = scmp.eq.s32.totalorder %s22, 1
      %p124 = por %p122, %p123
      %p125 = scmp.ne.s32.totalorder %s114, %s115
      %p126 = scmp.eq.s32.totalorder %s22, 0
      %p127 = por %p125, %p126
      %p128 = scmp.ne.s32.totalorder %s114, %s115
      %p129 = scmp.eq.s32.totalorder %s23, 1
      %p130 = por %p128, %p129
      %p132 = scmp.ne.s32.totalorder %s115, %s131
      %p133 = scmp.eq.s32.totalorder %s23, 0
      %p134 = por %p132, %p133
      %s135 = ssub.s32 %s24, %s36
      %s136 = ssub.s32 %s25, %s32
      %s137 = sor.u32 %s135, %s136
      %p138 = scmp.eq.s32.totalorder %s137, 0
      %s140 = sadd.s32 %s139, 1
      %s141 = scalar_select %p138, %s139, %s140
      %p144 = pneg %p138
      %p145 = scmp.eq.s32.totalorder %s17, 1
      %p146 = por %p144, %p145
      %p147 = scmp.ne.s32.totalorder %s139, %s142
      %p148 = scmp.eq.s32.totalorder %s17, 0
      %p149 = por %p147, %p148
      %p150 = scmp.ne.s32.totalorder %s139, %s142
      %p151 = scmp.eq.s32.totalorder %s22, 1
      %p152 = por %p150, %p151
      %p153 = scmp.ne.s32.totalorder %s142, %s143
      %p154 = scmp.eq.s32.totalorder %s22, 0
      %p155 = por %p153, %p154
      %p156 = scmp.ne.s32.totalorder %s142, %s143
      %p157 = scmp.eq.s32.totalorder %s23, 1
      %p158 = por %p156, %p157
      %p160 = scmp.ne.s32.totalorder %s143, %s159
      %p161 = scmp.eq.s32.totalorder %s23, 0
      %p162 = por %p160, %p161
      %p163 = scmp.le.s32.totalorder 1, %s17
      %p164 = scmp.lt.s32.totalorder %s17, 3
      %p165 = pnand %p163, %p164
      %p166 = pneg %p165
      // Predicated region
      $region9: #{tpu_custom_call.1} parent=5 // pred_check
        _
      $region10: #{tpu_custom_call.1} parent=5 // pred_check_branch
        %168 = sbr.rel (%p165) target = $region12
      $region11: #{tpu_custom_call.1} parent=5 // pred_region
        %s169 = ssub.s32 %s17, 1
        // Predicated region
        $region13: #{tpu_custom_call.1} parent=11 // pred_check
          %p170 = pneg %p78
        $region14: #{tpu_custom_call.1} parent=11 // pred_check_branch
          %172 = sbr.rel (%p170) target = $region16
        $region15: #{tpu_custom_call.1} parent=11 // pred_region
          _
        $region16: #{tpu_custom_call.1} parent=11 // pred_fallthru
          _
        // Predicated region
        $region17: #{tpu_custom_call.1} parent=11 // pred_check
          %p173 = pneg %p99
        $region18: #{tpu_custom_call.1} parent=11 // pred_check_branch
          %175 = sbr.rel (%p173) target = $region20
        $region19: #{tpu_custom_call.1} parent=11 // pred_region
          _
        $region20: #{tpu_custom_call.1} parent=11 // pred_fallthru
          _
      $region12: #{tpu_custom_call.1} parent=5 // pred_fallthru
        _
      %p176 = scmp.lt.s32.totalorder %s17, 2
      // Predicated region
      $region21: #{tpu_custom_call.1} parent=5 // pred_check
        %p177 = pneg %p176
      $region22: #{tpu_custom_call.1} parent=5 // pred_check_branch
        %179 = sbr.rel (%p177) target = $region24
      $region23: #{tpu_custom_call.1} parent=5 // pred_region
        // Predicated region
        $region25: #{tpu_custom_call.1} parent=23 // pred_check
          %p180 = pneg %p51
        $region26: #{tpu_custom_call.1} parent=23 // pred_check_branch
          %182 = sbr.rel (%p180) target = $region28
        $region27: #{tpu_custom_call.1} parent=23 // pred_region
          %s183 = smul.u32 12, %s25
          %p184 = scmp.lt.s32.totalorder %s24, 1
          %s185 = scalar_select %p184, %s24, 1
          %p186 = scmp.lt.s32.totalorder %s183, 11
          %s187 = scalar_select %p186, %s183, 11
          %s188 = smul.addr %s185, 12
          %s189 = sadd.s32 %s187, %s188
          %s190 = smul.addr %s189, 8
          %s191 = scalar_lea.vmem %s0, %s190
          %s192 = smul.u32 12, %s25
        $region28: #{tpu_custom_call.1} parent=23 // pred_fallthru
          _
      $region24: #{tpu_custom_call.1} parent=5 // pred_fallthru
        _
      %p193 = scmp.le.s32.totalorder 1, %s17
      %p194 = scmp.lt.s32.totalorder %s17, 3
      %p195 = pnand %p193, %p194
      %p196 = pneg %p195
      // Predicated region
      $region29: #{tpu_custom_call.1} parent=5 // pred_check
        _
      $region30: #{tpu_custom_call.1} parent=5 // pred_check_branch
        %198 = sbr.rel (%p195) target = $region32
      $region31: #{tpu_custom_call.1} parent=5 // pred_region
        %s199 = ssub.s32 %s17, 1
        %s200 = smul.u32 12, %s27
        %p201 = scmp.lt.s32.totalorder %s26, 1
        %s202 = scalar_select %p201, %s26, 1
        %p203 = scmp.lt.s32.totalorder %s200, 11
        %s204 = scalar_select %p203, %s200, 11
        %s205 = smul.addr %s202, 12
        %s206 = sadd.s32 %s204, %s205
        %s207 = smul.addr %s206, 8
        %s208 = scalar_lea.vmem %s0, %s207
        %p209 = pneg %p57
        %p210 = pneg %p54
        %p211 = pneg %p78
        %p212 = pneg %p75
        %p213 = pneg %p99
        %p214 = pneg %p96
        %p215 = pneg %p127
        %p216 = pneg %p124
        %s217 = sand.u32 %s114, 1
        %s218 = scalar_lea.sflag [#allocation3], %s217
        %s219 = sand.u32 %s114, 1
        %s220 = smul.addr %s219, 96
        %s221 = scalar_lea.vmem [#allocation2], %s220
        %p222 = pneg %p155
        %p223 = pneg %p152
        %s224 = sand.u32 %s142, 1
        %s225 = scalar_lea.sflag [#allocation5], %s224
        %s226 = sand.u32 %s142, 1
        %s227 = smul.addr %s226, 48
        %s228 = scalar_lea.vmem [#allocation4], %s227
        %s229 = smul.u32 12, %s27
        %p230 = scmp.lt.s32.totalorder %s26, 1
        %s231 = scalar_select %p230, %s26, 1
        %p232 = scmp.lt.s32.totalorder %s229, 11
        %s233 = scalar_select %p232, %s229, 11
        %s234 = smul.addr %s231, 12
        %s235 = sadd.s32 %s233, %s234
        %s236 = smul.addr %s235, 8
        %s237 = scalar_lea.vmem %s0, %s236
        %s238 = smul.u32 12, %s27
        %s239 = smul.u32 12, %s27
        %s240 = smul.u32 12, %s27
        %v242 = vld [vmem:[%s237] sm:$0xff]
        %v243 = vld [vmem:[%s237 + $0x8] sm:$0xff]
        %v244 = vld [vmem:[%s237 + $0x10] sm:$0xff]
        %v245 = vld [vmem:[%s237 + $0x18] sm:$0xff]
        %v246 = vld [vmem:[%s237 + $0x20] sm:$0xff]
        %v247 = vld [vmem:[%s237 + $0x28] sm:$0xff]
        %v248 = vld [vmem:[%s237 + $0x30] sm:$0xff]
        %v249 = vld [vmem:[%s237 + $0x38] sm:$0xff]
        %v250 = vld [vmem:[%s237 + $0x40] sm:$0xff]
        %v251 = vld [vmem:[%s237 + $0x48] sm:$0xff]
        %v252 = vld [vmem:[%s237 + $0x50] sm:$0xff]
        %v253 = vld [vmem:[%s237 + $0x58] sm:$0xff]
        %v254 = vpack.c.bf16 %v243, %v242
        %v255 = vpack.c.bf16 %v245, %v244
        %v256 = vpack.c.bf16 %v247, %v246
        %v257 = vpack.c.bf16 %v249, %v248
        %v258 = vpack.c.bf16 %v251, %v250
        %v259 = vpack.c.bf16 %v253, %v252
        %v260 = vld [vmem:[%s1] sm:$0xf]
        %v261 = vld [vmem:[%s1 + $0x4] sm:$0xf]
        %v262 = vld [vmem:[%s1 + $0x8] sm:$0xf]
        %v263 = vld [vmem:[%s1 + $0xc] sm:$0xf]
        %v264 = vld [vmem:[%s1 + $0x10] sm:$0xf]
        %v265 = vld [vmem:[%s1 + $0x14] sm:$0xf]
        %v266 = vld [vmem:[%s1 + $0x18] sm:$0xf]
        %v267 = vld [vmem:[%s1 + $0x1c] sm:$0xf]
        %v268 = vld [vmem:[%s2] sm:$0x1]
        %v270 = vperm.slane %v268, 0
        %v280 = vunpack.c.l.b16 %v260
        %v281 = vunpack.c.l.b16 %v261
        %v282 = vunpack.c.l.b16 %v262
        %v283 = vunpack.c.l.b16 %v263
        %v284 = vunpack.c.l.b16 %v264
        %v285 = vunpack.c.l.b16 %v265
        %v286 = vunpack.c.l.b16 %v266
        %v287 = vunpack.c.l.b16 %v267
        %v288 = vpack.c.b16 %v281, %v280
        %v289 = vpack.c.b16 %v283, %v282
        %v290 = vpack.c.b16 %v285, %v284
        %v291 = vpack.c.b16 %v287, %v286
        %vm296 = vcmask 523264
        %v298 = vsel %vm296, %v254, 0
        %v301 = vsel %vm296, %v255, 0
        %v304 = vsel %vm296, %v256, 0
        %v307 = vsel %vm296, %v257, 0
        %v310 = vsel %vm296, %v258, 0
        %v313 = vsel %vm296, %v259, 0
        %315 = vmatpush.bf16.msra.mxu0 0
        %316 = vmatpush.bf16.msra.mxu0 0
        %317 = vmatpush.bf16.msra.mxu0 0
        %318 = vmatpush.bf16.msra.mxu0 0
        %319 = vmatpush.bf16.msra.mxu0 %v291
        %320 = vmatpush.bf16.msra.mxu0 %v290
        %321 = vmatpush.bf16.msra.mxu0 %v289
        %322 = vmatpush.bf16.msra.mxu0 %v288
        %323 = vmatmul.bf16.gmra.mxu0 %v298
        %v324 = vpop.f32.mrf.mxu0
        %v325 = vadd.f32 %v270, %v324
        %v326 = vpop.f32.mrf.mxu0
        %v327 = vadd.f32 %v270, %v326
        %328 = vmatmul.bf16.gmra.mxu0 %v301
        %v329 = vpop.f32.mrf.mxu0
        %v330 = vadd.f32 %v270, %v329
        %v331 = vpop.f32.mrf.mxu0
        %v332 = vadd.f32 %v270, %v331
        %333 = vmatmul.bf16.gmra.mxu0 %v304
        %v334 = vpop.f32.mrf.mxu0
        %v335 = vadd.f32 %v270, %v334
        %v336 = vpop.f32.mrf.mxu0
        %v337 = vadd.f32 %v270, %v336
        %338 = vmatmul.bf16.gmra.mxu0 %v307
        %v339 = vpop.f32.mrf.mxu0
        %v340 = vadd.f32 %v270, %v339
        %v341 = vpop.f32.mrf.mxu0
        %v342 = vadd.f32 %v270, %v341
        %343 = vmatmul.bf16.gmra.mxu0 %v310
        %v344 = vpop.f32.mrf.mxu0
        %v345 = vadd.f32 %v270, %v344
        %v346 = vpop.f32.mrf.mxu0
        %v347 = vadd.f32 %v270, %v346
        %348 = vmatmul.bf16.gmra.mxu0 %v313
        %v349 = vpop.f32.mrf.mxu0
        %v350 = vadd.f32 %v270, %v349
        %v351 = vpop.f32.mrf.mxu0
        %v352 = vadd.f32 %v270, %v351
        %353 = vdwg.mxu0
        %354 = vst [vmem:[%s221] sm:$0xff] %v325
        %355 = vst [vmem:[%s221 + $0x8] sm:$0xff] %v327
        %356 = vst [vmem:[%s221 + $0x10] sm:$0xff] %v330
        %357 = vst [vmem:[%s221 + $0x18] sm:$0xff] %v332
        %358 = vst [vmem:[%s221 + $0x20] sm:$0xff] %v335
        %359 = vst [vmem:[%s221 + $0x28] sm:$0xff] %v337
        %360 = vst [vmem:[%s221 + $0x30] sm:$0xff] %v340
        %361 = vst [vmem:[%s221 + $0x38] sm:$0xff] %v342
        %362 = vst [vmem:[%s221 + $0x40] sm:$0xff] %v345
        %363 = vst [vmem:[%s221 + $0x48] sm:$0xff] %v347
        %364 = vst [vmem:[%s221 + $0x50] sm:$0xff] %v350
        %365 = vst [vmem:[%s221 + $0x58] sm:$0xff] %v352
        %v366 = vpack.c.bf16 %v325, %v325
        %v367 = vpack.c.bf16 %v327, %v327
        %v368 = vpack.c.bf16 %v330, %v330
        %v369 = vpack.c.bf16 %v332, %v332
        %v370 = vpack.c.bf16 %v335, %v335
        %v371 = vpack.c.bf16 %v337, %v337
        %v372 = vpack.c.bf16 %v340, %v340
        %v373 = vpack.c.bf16 %v342, %v342
        %v374 = vpack.c.bf16 %v345, %v345
        %v375 = vpack.c.bf16 %v347, %v347
        %v376 = vpack.c.bf16 %v350, %v350
        %v377 = vpack.c.bf16 %v352, %v352
        %378 = vst [vmem:[%s228] sm:$0xf] %v366
        %379 = vst [vmem:[%s228 + $0x4] sm:$0xf] %v367
        %380 = vst [vmem:[%s228 + $0x8] sm:$0xf] %v368
        %381 = vst [vmem:[%s228 + $0xc] sm:$0xf] %v369
        %382 = vst [vmem:[%s228 + $0x10] sm:$0xf] %v370
        %383 = vst [vmem:[%s228 + $0x14] sm:$0xf] %v371
        %384 = vst [vmem:[%s228 + $0x18] sm:$0xf] %v372
        %385 = vst [vmem:[%s228 + $0x1c] sm:$0xf] %v373
        %386 = vst [vmem:[%s228 + $0x20] sm:$0xf] %v374
        %387 = vst [vmem:[%s228 + $0x24] sm:$0xf] %v375
        %388 = vst [vmem:[%s228 + $0x28] sm:$0xf] %v376
        %389 = vst [vmem:[%s228 + $0x2c] sm:$0xf] %v377
        %s390 = sand.u32 %s114, 1
        %s391 = scalar_lea.sflag [#allocation3], %s390
        %s392 = sand.u32 %s114, 1
        %s393 = smul.addr %s392, 96
        %s394 = scalar_lea.vmem [#allocation2], %s393
        %s395 = sand.u32 %s142, 1
        %s396 = scalar_lea.sflag [#allocation5], %s395
        %s397 = sand.u32 %s142, 1
        %s398 = smul.addr %s397, 48
        %s399 = scalar_lea.vmem [#allocation4], %s398
        // Predicated region
        $region33: #{tpu_custom_call.1} parent=31 // pred_check
          %p400 = pneg %p124
        $region34: #{tpu_custom_call.1} parent=31 // pred_check_branch
          %402 = sbr.rel (%p400) target = $region36
        $region35: #{tpu_custom_call.1} parent=31 // pred_region
          %s403 = smul.u32 12, %s27
          %405 = vsyncadd %s391, 0
          %s406 = smul.addr %s26, 12
          %s407 = sadd.s32 %s403, %s406
          %s408 = smul.addr %s407, 8
          %s409 = scalar_lea.hbm %s3, %s408
          %s410 = sshll.u32 %s394, 4
          %s411 = int_to_ptr.vmem [resolvable:$true] %s410
          %s412 = sshll.u32 %s409, 4
          %s413 = int_to_ptr.hbm [resolvable:$true] %s412
          %418 = dma.vmem_to_hbm [thread:$0]  %s411, 1536, %s413, %s391, 128, 128, 8
        $region36: #{tpu_custom_call.1} parent=31 // pred_fallthru
          _
        // Predicated region
        $region37: #{tpu_custom_call.1} parent=31 // pred_check
          %p419 = pneg %p152
        $region38: #{tpu_custom_call.1} parent=31 // pred_check_branch
          %421 = sbr.rel (%p419) target = $region40
        $region39: #{tpu_custom_call.1} parent=31 // pred_region
          %s422 = smul.u32 12, %s27
          %424 = vsyncadd %s396, 0
          %s425 = smul.addr %s26, 12
          %s426 = sadd.s32 %s422, %s425
          %s427 = smul.addr %s426, 4
          %s428 = scalar_lea.hbm %s4, %s427
          %s429 = sshll.u32 %s399, 4
          %s430 = int_to_ptr.vmem [resolvable:$true] %s429
          %s431 = sshll.u32 %s428, 4
          %s432 = int_to_ptr.hbm [resolvable:$true] %s431
          %437 = dma.vmem_to_hbm [thread:$0]  %s430, 768, %s432, %s396, 64, 64, 4
        $region40: #{tpu_custom_call.1} parent=31 // pred_fallthru
          _
      $region32: #{tpu_custom_call.1} parent=5 // pred_fallthru
        _
      %p438 = scmp.le.s32.totalorder 2, %s17
      // Predicated region
      $region41: #{tpu_custom_call.1} parent=5 // pred_check
        %p439 = pneg %p438
      $region42: #{tpu_custom_call.1} parent=5 // pred_check_branch
        %441 = sbr.rel (%p439) target = $region44
      $region43: #{tpu_custom_call.1} parent=5 // pred_region
        %s442 = ssub.s32 %s17, 2
        // Predicated region
        $region45: #{tpu_custom_call.1} parent=43 // pred_check
          %p443 = pneg %p130
        $region46: #{tpu_custom_call.1} parent=43 // pred_check_branch
          %445 = sbr.rel (%p443) target = $region48
        $region47: #{tpu_custom_call.1} parent=43 // pred_region
          %s446 = sand.u32 %s115, 1
          %s447 = scalar_lea.sflag [#allocation3], %s446
          %s448 = sand.u32 %s115, 1
          %s449 = smul.addr %s448, 96
          %s450 = scalar_lea.vmem [#allocation2], %s449
          %452 = dma.done %s447, 1536
        $region48: #{tpu_custom_call.1} parent=43 // pred_fallthru
          _
        // Predicated region
        $region49: #{tpu_custom_call.1} parent=43 // pred_check
          %p453 = pneg %p158
        $region50: #{tpu_custom_call.1} parent=43 // pred_check_branch
          %455 = sbr.rel (%p453) target = $region52
        $region51: #{tpu_custom_call.1} parent=43 // pred_region
          %s456 = sand.u32 %s143, 1
          %s457 = scalar_lea.sflag [#allocation5], %s456
          %s458 = sand.u32 %s143, 1
          %s459 = smul.addr %s458, 48
          %s460 = scalar_lea.vmem [#allocation4], %s459
          %462 = dma.done %s457, 768
        $region52: #{tpu_custom_call.1} parent=43 // pred_fallthru
          _
      $region44: #{tpu_custom_call.1} parent=5 // pred_fallthru
        _
    $region6: #{tpu_custom_call.1} parent=1 // loop_footer
      %s21 = sadd.s32 1, %s17
    $region7: #{tpu_custom_call.1} parent=1 // loop_footer_branch
      %16 = sbr.rel target = $region3
    $region8: #{tpu_custom_call.1} parent=1 // loop_exit
      _
    %463 = vsyncpa [#allocation3], 1
    %s464 = scalar_lea.sflag [#allocation3], 1
    %465 = vsyncpa %s464, 1
    %466 = vsyncpa [#allocation5], 1
    %s467 = scalar_lea.sflag [#allocation5], 1
    %468 = vsyncpa %s467, 1

</llo_original>
